<compile_context>
chip_gen: v7x
topology: tpu7x:2x2x1
jax: 0.10.0
libtpu: 0.0.40
codegen_flags: <defaults>
</compile_context>

<pallas_src>
import jax
import jax.numpy as jnp
from jax import lax
from jax.experimental import pallas as pl
from jax.experimental.pallas import tpu as pltpu


_VMEM_LIMIT_BYTES = 32 * 1024 * 1024    # safe on v5e/v6e (128 MiB) and v7x (64 MiB phys)
_VMEM_BUDGET_BYTES = 22 * 1024 * 1024   # ~70% of the scoped limit for the working set


# --------------------------------------------------------------------------- #
# Path 1: batch-packed full-(N, N) blocks (small / medium N)                   #
# --------------------------------------------------------------------------- #
def _fused_batched_kernel(x1_ref, x2_ref, x11_ref, x12_ref, x13_ref, v4_ref):
    x1 = x1_ref[...]                       # (Bt, N, N)
    x2 = x2_ref[...]                       # (Bt, N, N)

    # v1 = per-batch transpose (XLU); only needed for the elementwise outputs.
    v1 = jnp.transpose(x1, (0, 2, 1))
    x11_ref[...] = x2 * v1
    x12_ref[...] = x1 * v1
    x13_ref[...] = v1 * v1

    # MXU fed directly from x1 (contract over dim 1 == j), no dependency on the
    # transpose above:  v4[b, i, k] = sum_j x1[b, j, i] * x2[b, j, k].
    v4_ref[...] = lax.dot_general(
        x1, x2,
        dimension_numbers=(((1,), (1,)), ((0,), (0,))),
        preferred_element_type=jnp.float32,
    )


def _pick_batch_tile(B, N, itemsize):
    """Largest divisor of B whose double-buffered working set (6 arrays) fits
    the VMEM budget, while keeping >=2 grid steps (megacore) when B >= 2."""
    per_batch = 6 * 2 * N * N * itemsize
    max_bt = max(1, _VMEM_BUDGET_BYTES // per_batch)
    if B >= 2:
        max_bt = min(max_bt, (B + 1) // 2)     # leave >=2 parallel grid steps
    bt = 1
    for d in range(1, B + 1):
        if B % d == 0 and d <= max_bt:
            bt = d
    return bt


def _fused_model_batched(x1, x2):
    B, N, _ = x1.shape
    bt = _pick_batch_tile(B, N, x1.dtype.itemsize)

    blk = pl.BlockSpec((bt, N, N), lambda b: (b, 0, 0))
    sds = jax.ShapeDtypeStruct((B, N, N), x1.dtype)

    return pl.pallas_call(
        _fused_batched_kernel,
        out_shape=(sds, sds, sds, sds),
        grid=(B // bt,),
        in_specs=[blk, blk],
        out_specs=(blk, blk, blk, blk),
        compiler_params=pltpu.CompilerParams(
            dimension_semantics=("parallel",),
            vmem_limit_bytes=_VMEM_LIMIT_BYTES,
        ),
        cost_estimate=pl.CostEstimate(
            flops=2 * B * N * N * N,
            transcendentals=0,
            bytes_accessed=6 * B * N * N * x1.dtype.itemsize,
        ),
    )(x1, x2)


# --------------------------------------------------------------------------- #
# Path 2: N-tiled path (large N)                                               #
# --------------------------------------------------------------------------- #
def _elemwise_tiled_kernel(x1r_ref, x1c_ref, x2_ref, x11_ref, x12_ref, x13_ref):
    # x1c_ref holds x1[b, j_tile, i_tile]; its 2-D transpose is the (i, j) tile
    # of v1 = x1^T.
    v1 = x1c_ref[0].T
    x11_ref[0] = x2_ref[0] * v1
    x12_ref[0] = x1r_ref[0] * v1
    x13_ref[0] = v1 * v1


def _bmm_tiled_kernel(x1_ref, x2_ref, v4_ref, acc_ref):
    @pl.when(pl.program_id(3) == 0)
    def _():
        acc_ref[...] = jnp.zeros_like(acc_ref)

    # x1 tile is x1[b, j_tile, i_tile]; contract its j (sublane) axis against
    # x2's j axis:  acc[i, k] += sum_j x1[j, i] * x2[j, k].
    acc_ref[...] += lax.dot_general(
        x1_ref[0], x2_ref[0],
        dimension_numbers=(((0,), (0,)), ((), ())),
        preferred_element_type=jnp.float32,
    )

    @pl.when(pl.program_id(3) == pl.num_programs(3) - 1)
    def _():
        v4_ref[0] = acc_ref[...].astype(v4_ref.dtype)


def _fused_model_tiled(x1, x2, *, tile=256):
    B, N, _ = x1.shape
    if N % tile != 0:
        tile = 128
    # TODO(synk): pad N up to a multiple of 128 instead of asserting.
    assert N % tile == 0, "N-tiled path requires N to be a multiple of 128"

    sds = jax.ShapeDtypeStruct((B, N, N), x1.dtype)
    nt = N // tile
    itemsize = x1.dtype.itemsize

    row = pl.BlockSpec((1, tile, tile), lambda b, i, j: (b, i, j))
    col = pl.BlockSpec((1, tile, tile), lambda b, i, j: (b, j, i))

    x11, x12, x13 = pl.pallas_call(
        _elemwise_tiled_kernel,
        out_shape=(sds, sds, sds),
        grid=(B, nt, nt),
        in_specs=[row, col, row],
        out_specs=(row, row, row),
        compiler_params=pltpu.CompilerParams(
            dimension_semantics=("parallel", "parallel", "parallel"),
            vmem_limit_bytes=_VMEM_LIMIT_BYTES,
        ),
        cost_estimate=pl.CostEstimate(
            flops=3 * B * N * N,
            transcendentals=0,
            bytes_accessed=6 * B * N * N * itemsize,
        ),
    )(x1, x1, x2)

    v4 = pl.pallas_call(
        _bmm_tiled_kernel,
        out_shape=sds,
        grid=(B, nt, nt, nt),
        in_specs=[
            pl.BlockSpec((1, tile, tile), lambda b, i, k, j: (b, j, i)),
            pl.BlockSpec((1, tile, tile), lambda b, i, k, j: (b, j, k)),
        ],
        out_specs=pl.BlockSpec((1, tile, tile), lambda b, i, k, j: (b, i, k)),
        scratch_shapes=[pltpu.VMEM((tile, tile), jnp.float32)],
        compiler_params=pltpu.CompilerParams(
            dimension_semantics=("parallel", "parallel", "parallel", "arbitrary"),
            vmem_limit_bytes=_VMEM_LIMIT_BYTES,
        ),
        cost_estimate=pl.CostEstimate(
            flops=2 * B * N * N * N,
            transcendentals=0,
            bytes_accessed=(2 * nt + 1) * B * N * N * itemsize,
        ),
    )(x1, x2)

    return x11, x12, x13, v4


# --------------------------------------------------------------------------- #
# Dispatcher + reference                                                       #
# --------------------------------------------------------------------------- #
def fused_model(x1, x2, *, force_tiled=False, tile=256):
    assert x1.shape == x2.shape and x1.dtype == x2.dtype
    B, N, M = x1.shape
    assert N == M, "square matrices required (matches reference semantics)"
    # Six full (N, N) double-buffered arrays stop fitting VMEM around N ~ 600;
    # switch to the N-tiled path before that.
    use_tiled = force_tiled or (12 * N * N * x1.dtype.itemsize > _VMEM_BUDGET_BYTES)
    if use_tiled:
        return _fused_model_tiled(x1, x2, tile=tile)
    return _fused_model_batched(x1, x2)


def _reference(x1, x2):
    v1 = jnp.transpose(x1, (0, 2, 1))
    v4 = jnp.einsum("bij,bjk->bik", v1, x2)
    return x2 * v1, x1 * v1, v1 * v1, v4


if __name__ == "__main__":
    key = jax.random.PRNGKey(0)
    k1, k2, k3, k4 = jax.random.split(key, 4)

    # Small shapes consistent with the module's (B, N, N) transpose/bmm pattern.
    B, N = 4, 128
    x1 = jax.random.normal(k1, (B, N, N), dtype=jnp.float32)
    x2 = jax.random.normal(k2, (B, N, N), dtype=jnp.float32)

    outs = jax.block_until_ready(fused_model(x1, x2))
    refs = _reference(x1, x2)
    for o, r in zip(outs, refs):
        assert o.shape == r.shape and o.dtype == r.dtype
        assert jnp.allclose(o, r, atol=1e-5, rtol=1e-5)

    # Also exercise the large-N tiled path (forced at a small shape for speed).
    B2, N2 = 2, 256
    y1 = jax.random.normal(k3, (B2, N2, N2), dtype=jnp.float32)
    y2 = jax.random.normal(k4, (B2, N2, N2), dtype=jnp.float32)

    outs_t = jax.block_until_ready(fused_model(y1, y2, force_tiled=True, tile=128))
    refs_t = _reference(y1, y2)
    for o, r in zip(outs_t, refs_t):
        assert o.shape == r.shape and o.dtype == r.dtype
        assert jnp.allclose(o, r, atol=1e-4, rtol=1e-4)

    print("KERNEL_OK")
</pallas_src>

<mosaic_0001>
module attributes {stable_mosaic.version = 11 : i64} {
  func.func @_fused_batched_kernel(%arg0: i32, %arg1: memref<2x128x128xf32, #tpu.memory_space<vmem>>, %arg2: memref<2x128x128xf32, #tpu.memory_space<vmem>>, %arg3: memref<2x128x128xf32, #tpu.memory_space<vmem>>, %arg4: memref<2x128x128xf32, #tpu.memory_space<vmem>>, %arg5: memref<2x128x128xf32, #tpu.memory_space<vmem>>, %arg6: memref<2x128x128xf32, #tpu.memory_space<vmem>>) attributes {dimension_semantics = [#tpu.dimension_semantics<parallel>], iteration_bounds = array<i64: 2>, scalar_prefetch = 0 : i64, scratch_operands = 0 : i64, tpu.core_type = #tpu.core_type<tc>, window_params = [{transform_indices = @transform_0, window_bounds = array<i64: 2, 128, 128>}, {transform_indices = @transform_1, window_bounds = array<i64: 2, 128, 128>}, {transform_indices = @transform_2, window_bounds = array<i64: 2, 128, 128>}, {transform_indices = @transform_3, window_bounds = array<i64: 2, 128, 128>}, {transform_indices = @transform_4, window_bounds = array<i64: 2, 128, 128>}, {transform_indices = @transform_5, window_bounds = array<i64: 2, 128, 128>}]} {
    %c0 = arith.constant 0 : index
    %c0_0 = arith.constant 0 : index
    %c0_1 = arith.constant 0 : index
    %0 = vector.load %arg1[%c0, %c0_0, %c0_1] : memref<2x128x128xf32, #tpu.memory_space<vmem>>, vector<2x128x128xf32>
    %c0_2 = arith.constant 0 : index
    %c0_3 = arith.constant 0 : index
    %c0_4 = arith.constant 0 : index
    %1 = vector.load %arg2[%c0_2, %c0_3, %c0_4] : memref<2x128x128xf32, #tpu.memory_space<vmem>>, vector<2x128x128xf32>
    %2 = tpu.transpose %0, [0, 2, 1] : vector<2x128x128xf32> -> vector<2x128x128xf32>
    %3 = arith.mulf %1, %2 : vector<2x128x128xf32>
    %c0_5 = arith.constant 0 : index
    %c0_6 = arith.constant 0 : index
    %c0_7 = arith.constant 0 : index
    %4 = vector.load %arg3[%c0_5, %c0_6, %c0_7] : memref<2x128x128xf32, #tpu.memory_space<vmem>>, vector<2x128x128xf32>
    tpu.vector_store %arg3[%c0_5, %c0_6, %c0_7], %3 {strides = array<i32>} : memref<2x128x128xf32, #tpu.memory_space<vmem>>, vector<2x128x128xf32>,
    %5 = arith.mulf %0, %2 : vector<2x128x128xf32>
    %c0_8 = arith.constant 0 : index
    %c0_9 = arith.constant 0 : index
    %c0_10 = arith.constant 0 : index
    %6 = vector.load %arg4[%c0_8, %c0_9, %c0_10] : memref<2x128x128xf32, #tpu.memory_space<vmem>>, vector<2x128x128xf32>
    tpu.vector_store %arg4[%c0_8, %c0_9, %c0_10], %5 {strides = array<i32>} : memref<2x128x128xf32, #tpu.memory_space<vmem>>, vector<2x128x128xf32>,
    %7 = arith.mulf %2, %2 : vector<2x128x128xf32>
    %c0_11 = arith.constant 0 : index
    %c0_12 = arith.constant 0 : index
    %c0_13 = arith.constant 0 : index
    %8 = vector.load %arg5[%c0_11, %c0_12, %c0_13] : memref<2x128x128xf32, #tpu.memory_space<vmem>>, vector<2x128x128xf32>
    tpu.vector_store %arg5[%c0_11, %c0_12, %c0_13], %7 {strides = array<i32>} : memref<2x128x128xf32, #tpu.memory_space<vmem>>, vector<2x128x128xf32>,
    %cst = arith.constant dense<0.000000e+00> : vector<2x128x128xf32>
    %9 = tpu.matmul %0, %1, %cst {dimension_numbers = #tpu.dot_dimension_numbers<[1], [1], [2], [2], [0, 0, 0, 2, 1, 2], [0], [0]>} : vector<2x128x128xf32>, vector<2x128x128xf32>, vector<2x128x128xf32> -> vector<2x128x128xf32>
    %c0_14 = arith.constant 0 : index
    %c0_15 = arith.constant 0 : index
    %c0_16 = arith.constant 0 : index
    %10 = vector.load %arg6[%c0_14, %c0_15, %c0_16] : memref<2x128x128xf32, #tpu.memory_space<vmem>>, vector<2x128x128xf32>
    tpu.vector_store %arg6[%c0_14, %c0_15, %c0_16], %9 {strides = array<i32>} : memref<2x128x128xf32, #tpu.memory_space<vmem>>, vector<2x128x128xf32>,
    return
  }
  func.func @transform_0(%arg0: i32) -> (i32, i32, i32) {
    %c0_i32 = arith.constant 0 : i32
    %c0_i32_0 = arith.constant 0 : i32
    %c0_i32_1 = arith.constant 0 : i32
    return %arg0, %c0_i32, %c0_i32_0 : i32, i32, i32
  }
  func.func @transform_1(%arg0: i32) -> (i32, i32, i32) {
    %c0_i32 = arith.constant 0 : i32
    %c0_i32_0 = arith.constant 0 : i32
    %c0_i32_1 = arith.constant 0 : i32
    return %arg0, %c0_i32, %c0_i32_0 : i32, i32, i32
  }
  func.func @transform_2(%arg0: i32) -> (i32, i32, i32) {
    %c0_i32 = arith.constant 0 : i32
    %c0_i32_0 = arith.constant 0 : i32
    %c0_i32_1 = arith.constant 0 : i32
    return %arg0, %c0_i32, %c0_i32_0 : i32, i32, i32
  }
  func.func @transform_3(%arg0: i32) -> (i32, i32, i32) {
    %c0_i32 = arith.constant 0 : i32
    %c0_i32_0 = arith.constant 0 : i32
    %c0_i32_1 = arith.constant 0 : i32
    return %arg0, %c0_i32, %c0_i32_0 : i32, i32, i32
  }
  func.func @transform_4(%arg0: i32) -> (i32, i32, i32) {
    %c0_i32 = arith.constant 0 : i32
    %c0_i32_0 = arith.constant 0 : i32
    %c0_i32_1 = arith.constant 0 : i32
    return %arg0, %c0_i32, %c0_i32_0 : i32, i32, i32
  }
  func.func @transform_5(%arg0: i32) -> (i32, i32, i32) {
    %c0_i32 = arith.constant 0 : i32
    %c0_i32_0 = arith.constant 0 : i32
    %c0_i32_1 = arith.constant 0 : i32
    return %arg0, %c0_i32, %c0_i32_0 : i32, i32, i32
  }
}

</mosaic_0001>

<llo_original>
// kernel: tpu_custom_call.1
$region0: #{tpu_custom_call.1}
  #allocation0 [shape = 'u32[]', space=smem, size = 0x4, offset = 0x4, fixed_abs, tag = 'smem constant byte address 0x4 - core index']
  #allocation1 [shape = 'u32[144,128]{1,0:T(1,128)}', space=vmem, size = 0x12000, scoped, tag = 'internal scratch']
  %s0 = inlined_call_operand.hbm [shape: f32[4,128,128], index: 0, kind: input, shape index: {}]
  %s1 = inlined_call_operand.hbm [shape: f32[4,128,128], index: 1, kind: input, shape index: {}]
  %s2 = inlined_call_operand.hbm [shape: f32[4,128,128], index: 2, kind: output, shape index: {0}]
  %s3 = inlined_call_operand.hbm [shape: f32[4,128,128], index: 3, kind: output, shape index: {1}]
  %s4 = inlined_call_operand.hbm [shape: f32[4,128,128], index: 4, kind: output, shape index: {2}]
  %s5 = inlined_call_operand.hbm [shape: f32[4,128,128], index: 5, kind: output, shape index: {3}]
  %6 = xla_tuple %s2, %s3, %s4, %s5
  %s7 = sld [smem:[#allocation0]]
  $region73: #{tpu_custom_call.1} parent=0
    _
  %s9 = ssub.s32 1, %s7
  %s10 = scalar_select 0, %s9, %s7
  $region1: #{tpu_custom_call.1} parent=0
    #allocation2 [shape = 'u8[262144]{0}', space=vmem, size = 0x40000, scoped, tag = 'input window, operand 0']
    #allocation3 [shape = 's32[2]{0}', space=sflag, size = 0x8, scoped, tag = 'scoped memory for tpu_custom_call.1']
    #allocation4 [shape = 's32[2]{0}', space=sflag, size = 0x8, scoped, tag = 'scoped memory for tpu_custom_call.1']
    #allocation5 [shape = 'u8[262144]{0}', space=vmem, size = 0x40000, scoped, tag = 'input window, operand 1']
    #allocation6 [shape = 's32[2]{0}', space=sflag, size = 0x8, scoped, tag = 'scoped memory for tpu_custom_call.1']
    #allocation7 [shape = 'u8[262144]{0}', space=vmem, size = 0x40000, scoped, tag = 'output window, operand 0']
    #allocation8 [shape = 'u8[262144]{0}', space=vmem, size = 0x40000, scoped, tag = 'output window, operand 1']
    #allocation9 [shape = 's32[2]{0}', space=sflag, size = 0x8, scoped, tag = 'scoped memory for tpu_custom_call.1']
    #allocation10 [shape = 'u8[262144]{0}', space=vmem, size = 0x40000, scoped, tag = 'output window, operand 2']
    #allocation11 [shape = 'u8[262144]{0}', space=vmem, size = 0x40000, scoped, tag = 'output window, operand 3']
    #allocation12 [shape = 's32[2]{0}', space=sflag, size = 0x8, scoped, tag = 'scoped memory for tpu_custom_call.1']
    %11 = vsyncpa [#allocation3], 0
    %s12 = scalar_lea.sflag [#allocation3], 1
    %13 = vsyncpa %s12, 0
    %14 = vsyncpa [#allocation6], 0
    %s15 = scalar_lea.sflag [#allocation6], 1
    %16 = vsyncpa %s15, 0
    %17 = vsyncpa [#allocation4], 0
    %s18 = scalar_lea.sflag [#allocation4], 1
    %19 = vsyncpa %s18, 0
    %20 = vsyncpa [#allocation9], 0
    %s21 = scalar_lea.sflag [#allocation9], 1
    %22 = vsyncpa %s21, 0
    %23 = vsyncpa [#allocation12], 0
    %s24 = scalar_lea.sflag [#allocation12], 1
    %25 = vsyncpa %s24, 0
    loop: start=0, step=1, limit=4
    $region2: #{tpu_custom_call.1} parent=1 // loop_pre_header
      _
    $region3: #{tpu_custom_call.1} parent=1 // loop_header
      %s27 = sphi 0, %s31
      %p28 = scmp.ge.s32.totalorder %s27, 4
      %s37 = sphi 0, %s39
      %s40 = sphi 0, %s37
      %s41 = sphi 0, %s40
      %s57 = sphi 0, %s41
      %s63 = sphi 0, %s65
      %s66 = sphi 0, %s63
      %s67 = sphi 0, %s66
      %s83 = sphi 0, %s67
      %s89 = sphi 0, %s91
      %s92 = sphi 0, %s89
      %s93 = sphi 0, %s92
      %s109 = sphi 0, %s93
      %s115 = sphi 0, %s117
      %s118 = sphi 0, %s115
      %s119 = sphi 0, %s118
      %s135 = sphi 0, %s119
      %s141 = sphi 0, %s143
      %s144 = sphi 0, %s141
      %s145 = sphi 0, %s144
      %s161 = sphi 0, %s145
      %s167 = sphi 0, %s169
      %s170 = sphi 0, %s167
      %s171 = sphi 0, %s170
      %s187 = sphi 0, %s171
    $region4: #{tpu_custom_call.1} parent=1 // loop_header_branch
      %30 = sbr.rel (%p28) target = $region8
    $region5: #{tpu_custom_call.1} parent=1 // loop_body
      %s32 = ssub.s32 %s27, 1
      %s33 = ssub.s32 %s27, 2
      %s34 = sadd.s32 %s27, 1
      %s35 = ssub.s32 %s27, %s34
      %p36 = scmp.eq.s32.totalorder %s35, 0
      %s38 = sadd.s32 %s37, 1
      %s39 = scalar_select %p36, %s37, %s38
      %p42 = pneg %p36
      %p43 = scmp.eq.s32.totalorder %s27, 1
      %p44 = por %p42, %p43
      %p45 = scmp.ne.s32.totalorder %s37, %s40
      %p46 = scmp.eq.s32.totalorder %s27, 0
      %p47 = por %p45, %p46
      %p48 = scmp.ne.s32.totalorder %s37, %s40
      %p49 = scmp.eq.s32.totalorder %s32, 1
      %p50 = por %p48, %p49
      %p51 = scmp.ne.s32.totalorder %s40, %s41
      %p52 = scmp.eq.s32.totalorder %s32, 0
      %p53 = por %p51, %p52
      %p54 = scmp.ne.s32.totalorder %s40, %s41
      %p55 = scmp.eq.s32.totalorder %s33, 1
      %p56 = por %p54, %p55
      %p58 = scmp.ne.s32.totalorder %s41, %s57
      %p59 = scmp.eq.s32.totalorder %s33, 0
      %p60 = por %p58, %p59
      %s61 = ssub.s32 %s27, %s34
      %p62 = scmp.eq.s32.totalorder %s61, 0
      %s64 = sadd.s32 %s63, 1
      %s65 = scalar_select %p62, %s63, %s64
      %p68 = pneg %p62
      %p69 = scmp.eq.s32.totalorder %s27, 1
      %p70 = por %p68, %p69
      %p71 = scmp.ne.s32.totalorder %s63, %s66
      %p72 = scmp.eq.s32.totalorder %s27, 0
      %p73 = por %p71, %p72
      %p74 = scmp.ne.s32.totalorder %s63, %s66
      %p75 = scmp.eq.s32.totalorder %s32, 1
      %p76 = por %p74, %p75
      %p77 = scmp.ne.s32.totalorder %s66, %s67
      %p78 = scmp.eq.s32.totalorder %s32, 0
      %p79 = por %p77, %p78
      %p80 = scmp.ne.s32.totalorder %s66, %s67
      %p81 = scmp.eq.s32.totalorder %s33, 1
      %p82 = por %p80, %p81
      %p84 = scmp.ne.s32.totalorder %s67, %s83
      %p85 = scmp.eq.s32.totalorder %s33, 0
      %p86 = por %p84, %p85
      %s87 = ssub.s32 %s27, %s34
      %p88 = scmp.eq.s32.totalorder %s87, 0
      %s90 = sadd.s32 %s89, 1
      %s91 = scalar_select %p88, %s89, %s90
      %p94 = pneg %p88
      %p95 = scmp.eq.s32.totalorder %s27, 1
      %p96 = por %p94, %p95
      %p97 = scmp.ne.s32.totalorder %s89, %s92
      %p98 = scmp.eq.s32.totalorder %s27, 0
      %p99 = por %p97, %p98
      %p100 = scmp.ne.s32.totalorder %s89, %s92
      %p101 = scmp.eq.s32.totalorder %s32, 1
      %p102 = por %p100, %p101
      %p103 = scmp.ne.s32.totalorder %s92, %s93
      %p104 = scmp.eq.s32.totalorder %s32, 0
      %p105 = por %p103, %p104
      %p106 = scmp.ne.s32.totalorder %s92, %s93
      %p107 = scmp.eq.s32.totalorder %s33, 1
      %p108 = por %p106, %p107
      %p110 = scmp.ne.s32.totalorder %s93, %s109
      %p111 = scmp.eq.s32.totalorder %s33, 0
      %p112 = por %p110, %p111
      %s113 = ssub.s32 %s27, %s34
      %p114 = scmp.eq.s32.totalorder %s113, 0
      %s116 = sadd.s32 %s115, 1
      %s117 = scalar_select %p114, %s115, %s116
      %p120 = pneg %p114
      %p121 = scmp.eq.s32.totalorder %s27, 1
      %p122 = por %p120, %p121
      %p123 = scmp.ne.s32.totalorder %s115, %s118
      %p124 = scmp.eq.s32.totalorder %s27, 0
      %p125 = por %p123, %p124
      %p126 = scmp.ne.s32.totalorder %s115, %s118
      %p127 = scmp.eq.s32.totalorder %s32, 1
      %p128 = por %p126, %p127
      %p129 = scmp.ne.s32.totalorder %s118, %s119
      %p130 = scmp.eq.s32.totalorder %s32, 0
      %p131 = por %p129, %p130
      %p132 = scmp.ne.s32.totalorder %s118, %s119
      %p133 = scmp.eq.s32.totalorder %s33, 1
      %p134 = por %p132, %p133
      %p136 = scmp.ne.s32.totalorder %s119, %s135
      %p137 = scmp.eq.s32.totalorder %s33, 0
      %p138 = por %p136, %p137
      %s139 = ssub.s32 %s27, %s34
      %p140 = scmp.eq.s32.totalorder %s139, 0
      %s142 = sadd.s32 %s141, 1
      %s143 = scalar_select %p140, %s141, %s142
      %p146 = pneg %p140
      %p147 = scmp.eq.s32.totalorder %s27, 1
      %p148 = por %p146, %p147
      %p149 = scmp.ne.s32.totalorder %s141, %s144
      %p150 = scmp.eq.s32.totalorder %s27, 0
      %p151 = por %p149, %p150
      %p152 = scmp.ne.s32.totalorder %s141, %s144
      %p153 = scmp.eq.s32.totalorder %s32, 1
      %p154 = por %p152, %p153
      %p155 = scmp.ne.s32.totalorder %s144, %s145
      %p156 = scmp.eq.s32.totalorder %s32, 0
      %p157 = por %p155, %p156
      %p158 = scmp.ne.s32.totalorder %s144, %s145
      %p159 = scmp.eq.s32.totalorder %s33, 1
      %p160 = por %p158, %p159
      %p162 = scmp.ne.s32.totalorder %s145, %s161
      %p163 = scmp.eq.s32.totalorder %s33, 0
      %p164 = por %p162, %p163
      %s165 = ssub.s32 %s27, %s34
      %p166 = scmp.eq.s32.totalorder %s165, 0
      %s168 = sadd.s32 %s167, 1
      %s169 = scalar_select %p166, %s167, %s168
      %p172 = pneg %p166
      %p173 = scmp.eq.s32.totalorder %s27, 1
      %p174 = por %p172, %p173
      %p175 = scmp.ne.s32.totalorder %s167, %s170
      %p176 = scmp.eq.s32.totalorder %s27, 0
      %p177 = por %p175, %p176
      %p178 = scmp.ne.s32.totalorder %s167, %s170
      %p179 = scmp.eq.s32.totalorder %s32, 1
      %p180 = por %p178, %p179
      %p181 = scmp.ne.s32.totalorder %s170, %s171
      %p182 = scmp.eq.s32.totalorder %s32, 0
      %p183 = por %p181, %p182
      %p184 = scmp.ne.s32.totalorder %s170, %s171
      %p185 = scmp.eq.s32.totalorder %s33, 1
      %p186 = por %p184, %p185
      %p188 = scmp.ne.s32.totalorder %s171, %s187
      %p189 = scmp.eq.s32.totalorder %s33, 0
      %p190 = por %p188, %p189
      %p191 = scmp.le.s32.totalorder 1, %s27
      %p192 = scmp.lt.s32.totalorder %s27, 3
      %p193 = pnand %p191, %p192
      %p194 = pneg %p193
      // Predicated region
      $region9: #{tpu_custom_call.1} parent=5 // pred_check
        _
      $region10: #{tpu_custom_call.1} parent=5 // pred_check_branch
        %196 = sbr.rel (%p193) target = $region12
      $region11: #{tpu_custom_call.1} parent=5 // pred_region
        %s197 = ssub.s32 %s27, 1
      $region12: #{tpu_custom_call.1} parent=5 // pred_fallthru
        _
      %p198 = scmp.lt.s32.totalorder %s27, 2
      // Predicated region
      $region13: #{tpu_custom_call.1} parent=5 // pred_check
        %p199 = pneg %p198
      $region14: #{tpu_custom_call.1} parent=5 // pred_check_branch
        %201 = sbr.rel (%p199) target = $region16
      $region15: #{tpu_custom_call.1} parent=5 // pred_region
        // Predicated region
        $region17: #{tpu_custom_call.1} parent=15 // pred_check
          %p202 = pneg %p47
        $region18: #{tpu_custom_call.1} parent=15 // pred_check_branch
          %204 = sbr.rel (%p202) target = $region20
        $region19: #{tpu_custom_call.1} parent=15 // pred_region
          %s205 = sand.u32 %s37, 1
          %s206 = scalar_lea.sflag [#allocation3], %s205
          %s207 = sand.u32 %s37, 1
          %s208 = smul.addr %s207, 256
          %s209 = scalar_lea.vmem [#allocation2], %s208
          %s210 = smul.u32 2, %s27
          %s212 = ssub.s32 4096, 4096
          %213 = vsyncadd %s206, %s212
          %s214 = smul.addr %s210, 16
          %s215 = smul.addr %s214, 128
          %s216 = scalar_lea.hbm %s0, %s215
          %s217 = sshll.u32 %s209, 4
          %s218 = int_to_ptr.vmem [resolvable:$true] %s217
          %223 = dma.hbm_to_vmem [thread:$0]  %s216, 4096, %s218, %s206, 128, 128, 8
        $region20: #{tpu_custom_call.1} parent=15 // pred_fallthru
          _
        // Predicated region
        $region21: #{tpu_custom_call.1} parent=15 // pred_check
          %p224 = pneg %p73
        $region22: #{tpu_custom_call.1} parent=15 // pred_check_branch
          %226 = sbr.rel (%p224) target = $region24
        $region23: #{tpu_custom_call.1} parent=15 // pred_region
          %s227 = sand.u32 %s63, 1
          %s228 = scalar_lea.sflag [#allocation6], %s227
          %s229 = sand.u32 %s63, 1
          %s230 = smul.addr %s229, 256
          %s231 = scalar_lea.vmem [#allocation5], %s230
          %s232 = smul.u32 2, %s27
          %s234 = ssub.s32 4096, 4096
          %235 = vsyncadd %s228, %s234
          %s236 = smul.addr %s232, 16
          %s237 = smul.addr %s236, 128
          %s238 = scalar_lea.hbm %s1, %s237
          %s239 = sshll.u32 %s231, 4
          %s240 = int_to_ptr.vmem [resolvable:$true] %s239
          %245 = dma.hbm_to_vmem [thread:$0]  %s238, 4096, %s240, %s228, 128, 128, 8
        $region24: #{tpu_custom_call.1} parent=15 // pred_fallthru
          _
      $region16: #{tpu_custom_call.1} parent=5 // pred_fallthru
        _
      %p246 = scmp.le.s32.totalorder 1, %s27
      %p247 = scmp.lt.s32.totalorder %s27, 3
      %p248 = pnand %p246, %p247
      %p249 = pneg %p248
      // Predicated region
      $region25: #{tpu_custom_call.1} parent=5 // pred_check
        _
      $region26: #{tpu_custom_call.1} parent=5 // pred_check_branch
        %251 = sbr.rel (%p248) target = $region28
      $region27: #{tpu_custom_call.1} parent=5 // pred_region
        %s252 = ssub.s32 %s27, 1
        %s253 = sand.u32 %s40, 1
        %s254 = scalar_lea.sflag [#allocation3], %s253
        %s255 = sand.u32 %s40, 1
        %s256 = smul.addr %s255, 256
        %s257 = scalar_lea.vmem [#allocation2], %s256
        // Predicated region
        $region29: #{tpu_custom_call.1} parent=27 // pred_check
          %p258 = pneg %p53
        $region30: #{tpu_custom_call.1} parent=27 // pred_check_branch
          %260 = sbr.rel (%p258) target = $region32
        $region31: #{tpu_custom_call.1} parent=27 // pred_region
          %261 = dma.done %s254, 4096
        $region32: #{tpu_custom_call.1} parent=27 // pred_fallthru
          _
        %s262 = sand.u32 %s66, 1
        %s263 = scalar_lea.sflag [#allocation6], %s262
        %s264 = sand.u32 %s66, 1
        %s265 = smul.addr %s264, 256
        %s266 = scalar_lea.vmem [#allocation5], %s265
        // Predicated region
        $region33: #{tpu_custom_call.1} parent=27 // pred_check
          %p267 = pneg %p79
        $region34: #{tpu_custom_call.1} parent=27 // pred_check_branch
          %269 = sbr.rel (%p267) target = $region36
        $region35: #{tpu_custom_call.1} parent=27 // pred_region
          %270 = dma.done %s263, 4096
        $region36: #{tpu_custom_call.1} parent=27 // pred_fallthru
          _
        %s271 = sand.u32 %s40, 1
        %s272 = scalar_lea.sflag [#allocation3], %s271
        %s273 = sand.u32 %s40, 1
        %s274 = smul.addr %s273, 256
        %s275 = scalar_lea.vmem [#allocation2], %s274
        %p276 = pneg %p53
        %p277 = pneg %p50
        %s278 = sand.u32 %s66, 1
        %s279 = scalar_lea.sflag [#allocation6], %s278
        %s280 = sand.u32 %s66, 1
        %s281 = smul.addr %s280, 256
        %s282 = scalar_lea.vmem [#allocation5], %s281
        %p283 = pneg %p79
        %p284 = pneg %p76
        %p285 = pneg %p105
        %p286 = pneg %p102
        %s287 = sand.u32 %s92, 1
        %s288 = scalar_lea.sflag [#allocation4], %s287
        %s289 = sand.u32 %s92, 1
        %s290 = smul.addr %s289, 256
        %s291 = scalar_lea.vmem [#allocation7], %s290
        %p292 = pneg %p131
        %p293 = pneg %p128
        %s294 = sand.u32 %s32, 1
        %s295 = scalar_lea.sflag [#allocation9], %s294
        %s296 = sand.u32 %s118, 1
        %s297 = smul.addr %s296, 256
        %s298 = scalar_lea.vmem [#allocation8], %s297
        %p299 = pneg %p157
        %p300 = pneg %p154
        %s301 = sand.u32 %s32, 1
        %s302 = scalar_lea.sflag [#allocation9], %s301
        %s303 = sand.u32 %s144, 1
        %s304 = smul.addr %s303, 256
        %s305 = scalar_lea.vmem [#allocation10], %s304
        %p306 = pneg %p183
        %p307 = pneg %p180
        %s308 = sand.u32 %s170, 1
        %s309 = scalar_lea.sflag [#allocation12], %s308
        %s310 = sand.u32 %s170, 1
        %s311 = smul.addr %s310, 256
        %s312 = scalar_lea.vmem [#allocation11], %s311
        %s313 = smul.u32 2, %s32
        %s314 = smul.u32 2, %s32
        %s315 = smul.u32 2, %s32
        %s316 = smul.u32 2, %s32
        %s317 = smul.u32 2, %s32
        %s318 = smul.u32 2, %s32
        %v319 = vld [vmem:[%s257] sm:$0xff]
        %v320 = vld [vmem:[%s257 + $0x8] sm:$0xff]
        %v321 = vld [vmem:[%s257 + $0x10] sm:$0xff]
        %v322 = vld [vmem:[%s257 + $0x18] sm:$0xff]
        %v323 = vld [vmem:[%s257 + $0x20] sm:$0xff]
        %v324 = vld [vmem:[%s257 + $0x28] sm:$0xff]
        %v325 = vld [vmem:[%s257 + $0x30] sm:$0xff]
        %v326 = vld [vmem:[%s257 + $0x38] sm:$0xff]
        %v327 = vld [vmem:[%s257 + $0x40] sm:$0xff]
        %v328 = vld [vmem:[%s257 + $0x48] sm:$0xff]
        %v329 = vld [vmem:[%s257 + $0x50] sm:$0xff]
        %v330 = vld [vmem:[%s257 + $0x58] sm:$0xff]
        %v331 = vld [vmem:[%s257 + $0x60] sm:$0xff]
        %v332 = vld [vmem:[%s257 + $0x68] sm:$0xff]
        %v333 = vld [vmem:[%s257 + $0x70] sm:$0xff]
        %v334 = vld [vmem:[%s257 + $0x78] sm:$0xff]
        %v335 = vld [vmem:[%s257 + $0x80] sm:$0xff]
        %v336 = vld [vmem:[%s257 + $0x88] sm:$0xff]
        %v337 = vld [vmem:[%s257 + $0x90] sm:$0xff]
        %v338 = vld [vmem:[%s257 + $0x98] sm:$0xff]
        %v339 = vld [vmem:[%s257 + $0xa0] sm:$0xff]
        %v340 = vld [vmem:[%s257 + $0xa8] sm:$0xff]
        %v341 = vld [vmem:[%s257 + $0xb0] sm:$0xff]
        %v342 = vld [vmem:[%s257 + $0xb8] sm:$0xff]
        %v343 = vld [vmem:[%s257 + $0xc0] sm:$0xff]
        %v344 = vld [vmem:[%s257 + $0xc8] sm:$0xff]
        %v345 = vld [vmem:[%s257 + $0xd0] sm:$0xff]
        %v346 = vld [vmem:[%s257 + $0xd8] sm:$0xff]
        %v347 = vld [vmem:[%s257 + $0xe0] sm:$0xff]
        %v348 = vld [vmem:[%s257 + $0xe8] sm:$0xff]
        %v349 = vld [vmem:[%s257 + $0xf0] sm:$0xff]
        %v350 = vld [vmem:[%s257 + $0xf8] sm:$0xff]
        %v351 = vld [vmem:[%s266] sm:$0xff]
        %v352 = vld [vmem:[%s266 + $0x8] sm:$0xff]
        %v353 = vld [vmem:[%s266 + $0x10] sm:$0xff]
        %v354 = vld [vmem:[%s266 + $0x18] sm:$0xff]
        %v355 = vld [vmem:[%s266 + $0x20] sm:$0xff]
        %v356 = vld [vmem:[%s266 + $0x28] sm:$0xff]
        %v357 = vld [vmem:[%s266 + $0x30] sm:$0xff]
        %v358 = vld [vmem:[%s266 + $0x38] sm:$0xff]
        %v359 = vld [vmem:[%s266 + $0x40] sm:$0xff]
        %v360 = vld [vmem:[%s266 + $0x48] sm:$0xff]
        %v361 = vld [vmem:[%s266 + $0x50] sm:$0xff]
        %v362 = vld [vmem:[%s266 + $0x58] sm:$0xff]
        %v363 = vld [vmem:[%s266 + $0x60] sm:$0xff]
        %v364 = vld [vmem:[%s266 + $0x68] sm:$0xff]
        %v365 = vld [vmem:[%s266 + $0x70] sm:$0xff]
        %v366 = vld [vmem:[%s266 + $0x78] sm:$0xff]
        %v367 = vld [vmem:[%s266 + $0x80] sm:$0xff]
        %v368 = vld [vmem:[%s266 + $0x88] sm:$0xff]
        %v369 = vld [vmem:[%s266 + $0x90] sm:$0xff]
        %v370 = vld [vmem:[%s266 + $0x98] sm:$0xff]
        %v371 = vld [vmem:[%s266 + $0xa0] sm:$0xff]
        %v372 = vld [vmem:[%s266 + $0xa8] sm:$0xff]
        %v373 = vld [vmem:[%s266 + $0xb0] sm:$0xff]
        %v374 = vld [vmem:[%s266 + $0xb8] sm:$0xff]
        %v375 = vld [vmem:[%s266 + $0xc0] sm:$0xff]
        %v376 = vld [vmem:[%s266 + $0xc8] sm:$0xff]
        %v377 = vld [vmem:[%s266 + $0xd0] sm:$0xff]
        %v378 = vld [vmem:[%s266 + $0xd8] sm:$0xff]
        %v379 = vld [vmem:[%s266 + $0xe0] sm:$0xff]
        %v380 = vld [vmem:[%s266 + $0xe8] sm:$0xff]
        %v381 = vld [vmem:[%s266 + $0xf0] sm:$0xff]
        %v382 = vld [vmem:[%s266 + $0xf8] sm:$0xff]
        %383 = vxpose.xlu0.b32.start [1/16] %v319, 128
        %384 = vxpose.xlu0.b32.cont [2/16] %v320, 128
        %385 = vxpose.xlu0.b32.cont [3/16] %v321, 128
        %386 = vxpose.xlu0.b32.cont [4/16] %v322, 128
        %387 = vxpose.xlu0.b32.cont [5/16] %v323, 128
        %388 = vxpose.xlu0.b32.cont [6/16] %v324, 128
        %389 = vxpose.xlu0.b32.cont [7/16] %v325, 128
        %390 = vxpose.xlu0.b32.cont [8/16] %v326, 128
        %391 = vxpose.xlu0.b32.cont [9/16] %v327, 128
        %392 = vxpose.xlu0.b32.cont [10/16] %v328, 128
        %393 = vxpose.xlu0.b32.cont [11/16] %v329, 128
        %394 = vxpose.xlu0.b32.cont [12/16] %v330, 128
        %395 = vxpose.xlu0.b32.cont [13/16] %v331, 128
        %396 = vxpose.xlu0.b32.cont [14/16] %v332, 128
        %397 = vxpose.xlu0.b32.cont [15/16] %v333, 128
        %398 = vxpose.xlu0.b32.end [16/16] %v334, 128
        %v399 = vpop.trf.xlu0
        %v400 = vpop.trf.xlu0
        %v401 = vpop.trf.xlu0
        %v402 = vpop.trf.xlu0
        %v403 = vpop.trf.xlu0
        %v404 = vpop.trf.xlu0
        %v405 = vpop.trf.xlu0
        %v406 = vpop.trf.xlu0
        %v407 = vpop.trf.xlu0
        %v408 = vpop.trf.xlu0
        %v409 = vpop.trf.xlu0
        %v410 = vpop.trf.xlu0
        %v411 = vpop.trf.xlu0
        %v412 = vpop.trf.xlu0
        %v413 = vpop.trf.xlu0
        %v414 = vpop.trf.xlu0
        %415 = vxpose.xlu0.b32.start [1/16] %v335, 128
        %416 = vxpose.xlu0.b32.cont [2/16] %v336, 128
        %417 = vxpose.xlu0.b32.cont [3/16] %v337, 128
        %418 = vxpose.xlu0.b32.cont [4/16] %v338, 128
        %419 = vxpose.xlu0.b32.cont [5/16] %v339, 128
        %420 = vxpose.xlu0.b32.cont [6/16] %v340, 128
        %421 = vxpose.xlu0.b32.cont [7/16] %v341, 128
        %422 = vxpose.xlu0.b32.cont [8/16] %v342, 128
        %423 = vxpose.xlu0.b32.cont [9/16] %v343, 128
        %424 = vxpose.xlu0.b32.cont [10/16] %v344, 128
        %425 = vxpose.xlu0.b32.cont [11/16] %v345, 128
        %426 = vxpose.xlu0.b32.cont [12/16] %v346, 128
        %427 = vxpose.xlu0.b32.cont [13/16] %v347, 128
        %428 = vxpose.xlu0.b32.cont [14/16] %v348, 128
        %429 = vxpose.xlu0.b32.cont [15/16] %v349, 128
        %430 = vxpose.xlu0.b32.end [16/16] %v350, 128
        %v431 = vpop.trf.xlu0
        %v432 = vpop.trf.xlu0
        %v433 = vpop.trf.xlu0
        %v434 = vpop.trf.xlu0
        %v435 = vpop.trf.xlu0
        %v436 = vpop.trf.xlu0
        %v437 = vpop.trf.xlu0
        %v438 = vpop.trf.xlu0
        %v439 = vpop.trf.xlu0
        %v440 = vpop.trf.xlu0
        %v441 = vpop.trf.xlu0
        %v442 = vpop.trf.xlu0
        %v443 = vpop.trf.xlu0
        %v444 = vpop.trf.xlu0
        %v445 = vpop.trf.xlu0
        %v446 = vpop.trf.xlu0
        %v447 = vmul.f32 %v351, %v399
        %v448 = vmul.f32 %v352, %v400
        %v449 = vmul.f32 %v353, %v401
        %v450 = vmul.f32 %v354, %v402
        %v451 = vmul.f32 %v355, %v403
        %v452 = vmul.f32 %v356, %v404
        %v453 = vmul.f32 %v357, %v405
        %v454 = vmul.f32 %v358, %v406
        %v455 = vmul.f32 %v359, %v407
        %v456 = vmul.f32 %v360, %v408
        %v457 = vmul.f32 %v361, %v409
        %v458 = vmul.f32 %v362, %v410
        %v459 = vmul.f32 %v363, %v411
        %v460 = vmul.f32 %v364, %v412
        %v461 = vmul.f32 %v365, %v413
        %v462 = vmul.f32 %v366, %v414
        %v463 = vmul.f32 %v367, %v431
        %v464 = vmul.f32 %v368, %v432
        %v465 = vmul.f32 %v369, %v433
        %v466 = vmul.f32 %v370, %v434
        %v467 = vmul.f32 %v371, %v435
        %v468 = vmul.f32 %v372, %v436
        %v469 = vmul.f32 %v373, %v437
        %v470 = vmul.f32 %v374, %v438
        %v471 = vmul.f32 %v375, %v439
        %v472 = vmul.f32 %v376, %v440
        %v473 = vmul.f32 %v377, %v441
        %v474 = vmul.f32 %v378, %v442
        %v475 = vmul.f32 %v379, %v443
        %v476 = vmul.f32 %v380, %v444
        %v477 = vmul.f32 %v381, %v445
        %v478 = vmul.f32 %v382, %v446
        %479 = vst [vmem:[%s291] sm:$0xff] %v447
        %480 = vst [vmem:[%s291 + $0x8] sm:$0xff] %v448
        %481 = vst [vmem:[%s291 + $0x10] sm:$0xff] %v449
        %482 = vst [vmem:[%s291 + $0x18] sm:$0xff] %v450
        %483 = vst [vmem:[%s291 + $0x20] sm:$0xff] %v451
        %484 = vst [vmem:[%s291 + $0x28] sm:$0xff] %v452
        %485 = vst [vmem:[%s291 + $0x30] sm:$0xff] %v453
        %486 = vst [vmem:[%s291 + $0x38] sm:$0xff] %v454
        %487 = vst [vmem:[%s291 + $0x40] sm:$0xff] %v455
        %488 = vst [vmem:[%s291 + $0x48] sm:$0xff] %v456
        %489 = vst [vmem:[%s291 + $0x50] sm:$0xff] %v457
        %490 = vst [vmem:[%s291 + $0x58] sm:$0xff] %v458
        %491 = vst [vmem:[%s291 + $0x60] sm:$0xff] %v459
        %492 = vst [vmem:[%s291 + $0x68] sm:$0xff] %v460
        %493 = vst [vmem:[%s291 + $0x70] sm:$0xff] %v461
        %494 = vst [vmem:[%s291 + $0x78] sm:$0xff] %v462
        %495 = vst [vmem:[%s291 + $0x80] sm:$0xff] %v463
        %496 = vst [vmem:[%s291 + $0x88] sm:$0xff] %v464
        %497 = vst [vmem:[%s291 + $0x90] sm:$0xff] %v465
        %498 = vst [vmem:[%s291 + $0x98] sm:$0xff] %v466
        %499 = vst [vmem:[%s291 + $0xa0] sm:$0xff] %v467
        %500 = vst [vmem:[%s291 + $0xa8] sm:$0xff] %v468
        %501 = vst [vmem:[%s291 + $0xb0] sm:$0xff] %v469
        %502 = vst [vmem:[%s291 + $0xb8] sm:$0xff] %v470
        %503 = vst [vmem:[%s291 + $0xc0] sm:$0xff] %v471
        %504 = vst [vmem:[%s291 + $0xc8] sm:$0xff] %v472
        %505 = vst [vmem:[%s291 + $0xd0] sm:$0xff] %v473
        %506 = vst [vmem:[%s291 + $0xd8] sm:$0xff] %v474
        %507 = vst [vmem:[%s291 + $0xe0] sm:$0xff] %v475
        %508 = vst [vmem:[%s291 + $0xe8] sm:$0xff] %v476
        %509 = vst [vmem:[%s291 + $0xf0] sm:$0xff] %v477
        %510 = vst [vmem:[%s291 + $0xf8] sm:$0xff] %v478
        %v511 = vmul.f32 %v319, %v399
        %v512 = vmul.f32 %v320, %v400
        %v513 = vmul.f32 %v321, %v401
        %v514 = vmul.f32 %v322, %v402
        %v515 = vmul.f32 %v323, %v403
        %v516 = vmul.f32 %v324, %v404
        %v517 = vmul.f32 %v325, %v405
        %v518 = vmul.f32 %v326, %v406
        %v519 = vmul.f32 %v327, %v407
        %v520 = vmul.f32 %v328, %v408
        %v521 = vmul.f32 %v329, %v409
        %v522 = vmul.f32 %v330, %v410
        %v523 = vmul.f32 %v331, %v411
        %v524 = vmul.f32 %v332, %v412
        %v525 = vmul.f32 %v333, %v413
        %v526 = vmul.f32 %v334, %v414
        %v527 = vmul.f32 %v335, %v431
        %v528 = vmul.f32 %v336, %v432
        %v529 = vmul.f32 %v337, %v433
        %v530 = vmul.f32 %v338, %v434
        %v531 = vmul.f32 %v339, %v435
        %v532 = vmul.f32 %v340, %v436
        %v533 = vmul.f32 %v341, %v437
        %v534 = vmul.f32 %v342, %v438
        %v535 = vmul.f32 %v343, %v439
        %v536 = vmul.f32 %v344, %v440
        %v537 = vmul.f32 %v345, %v441
        %v538 = vmul.f32 %v346, %v442
        %v539 = vmul.f32 %v347, %v443
        %v540 = vmul.f32 %v348, %v444
        %v541 = vmul.f32 %v349, %v445
        %v542 = vmul.f32 %v350, %v446
        %543 = vst [vmem:[%s298] sm:$0xff] %v511
        %544 = vst [vmem:[%s298 + $0x8] sm:$0xff] %v512
        %545 = vst [vmem:[%s298 + $0x10] sm:$0xff] %v513
        %546 = vst [vmem:[%s298 + $0x18] sm:$0xff] %v514
        %547 = vst [vmem:[%s298 + $0x20] sm:$0xff] %v515
        %548 = vst [vmem:[%s298 + $0x28] sm:$0xff] %v516
        %549 = vst [vmem:[%s298 + $0x30] sm:$0xff] %v517
        %550 = vst [vmem:[%s298 + $0x38] sm:$0xff] %v518
        %551 = vst [vmem:[%s298 + $0x40] sm:$0xff] %v519
        %552 = vst [vmem:[%s298 + $0x48] sm:$0xff] %v520
        %553 = vst [vmem:[%s298 + $0x50] sm:$0xff] %v521
        %554 = vst [vmem:[%s298 + $0x58] sm:$0xff] %v522
        %555 = vst [vmem:[%s298 + $0x60] sm:$0xff] %v523
        %556 = vst [vmem:[%s298 + $0x68] sm:$0xff] %v524
        %557 = vst [vmem:[%s298 + $0x70] sm:$0xff] %v525
        %558 = vst [vmem:[%s298 + $0x78] sm:$0xff] %v526
        %559 = vst [vmem:[%s298 + $0x80] sm:$0xff] %v527
        %560 = vst [vmem:[%s298 + $0x88] sm:$0xff] %v528
        %561 = vst [vmem:[%s298 + $0x90] sm:$0xff] %v529
        %562 = vst [vmem:[%s298 + $0x98] sm:$0xff] %v530
        %563 = vst [vmem:[%s298 + $0xa0] sm:$0xff] %v531
        %564 = vst [vmem:[%s298 + $0xa8] sm:$0xff] %v532
        %565 = vst [vmem:[%s298 + $0xb0] sm:$0xff] %v533
        %566 = vst [vmem:[%s298 + $0xb8] sm:$0xff] %v534
        %567 = vst [vmem:[%s298 + $0xc0] sm:$0xff] %v535
        %568 = vst [vmem:[%s298 + $0xc8] sm:$0xff] %v536
        %569 = vst [vmem:[%s298 + $0xd0] sm:$0xff] %v537
        %570 = vst [vmem:[%s298 + $0xd8] sm:$0xff] %v538
        %571 = vst [vmem:[%s298 + $0xe0] sm:$0xff] %v539
        %572 = vst [vmem:[%s298 + $0xe8] sm:$0xff] %v540
        %573 = vst [vmem:[%s298 + $0xf0] sm:$0xff] %v541
        %574 = vst [vmem:[%s298 + $0xf8] sm:$0xff] %v542
        %v575 = vmul.f32 %v399, %v399
        %v576 = vmul.f32 %v400, %v400
        %v577 = vmul.f32 %v401, %v401
        %v578 = vmul.f32 %v402, %v402
        %v579 = vmul.f32 %v403, %v403
        %v580 = vmul.f32 %v404, %v404
        %v581 = vmul.f32 %v405, %v405
        %v582 = vmul.f32 %v406, %v406
        %v583 = vmul.f32 %v407, %v407
        %v584 = vmul.f32 %v408, %v408
        %v585 = vmul.f32 %v409, %v409
        %v586 = vmul.f32 %v410, %v410
        %v587 = vmul.f32 %v411, %v411
        %v588 = vmul.f32 %v412, %v412
        %v589 = vmul.f32 %v413, %v413
        %v590 = vmul.f32 %v414, %v414
        %v591 = vmul.f32 %v431, %v431
        %v592 = vmul.f32 %v432, %v432
        %v593 = vmul.f32 %v433, %v433
        %v594 = vmul.f32 %v434, %v434
        %v595 = vmul.f32 %v435, %v435
        %v596 = vmul.f32 %v436, %v436
        %v597 = vmul.f32 %v437, %v437
        %v598 = vmul.f32 %v438, %v438
        %v599 = vmul.f32 %v439, %v439
        %v600 = vmul.f32 %v440, %v440
        %v601 = vmul.f32 %v441, %v441
        %v602 = vmul.f32 %v442, %v442
        %v603 = vmul.f32 %v443, %v443
        %v604 = vmul.f32 %v444, %v444
        %v605 = vmul.f32 %v445, %v445
        %v606 = vmul.f32 %v446, %v446
        %607 = vst [vmem:[%s305] sm:$0xff] %v575
        %608 = vst [vmem:[%s305 + $0x8] sm:$0xff] %v576
        %609 = vst [vmem:[%s305 + $0x10] sm:$0xff] %v577
        %610 = vst [vmem:[%s305 + $0x18] sm:$0xff] %v578
        %611 = vst [vmem:[%s305 + $0x20] sm:$0xff] %v579
        %612 = vst [vmem:[%s305 + $0x28] sm:$0xff] %v580
        %613 = vst [vmem:[%s305 + $0x30] sm:$0xff] %v581
        %614 = vst [vmem:[%s305 + $0x38] sm:$0xff] %v582
        %615 = vst [vmem:[%s305 + $0x40] sm:$0xff] %v583
        %616 = vst [vmem:[%s305 + $0x48] sm:$0xff] %v584
        %617 = vst [vmem:[%s305 + $0x50] sm:$0xff] %v585
        %618 = vst [vmem:[%s305 + $0x58] sm:$0xff] %v586
        %619 = vst [vmem:[%s305 + $0x60] sm:$0xff] %v587
        %620 = vst [vmem:[%s305 + $0x68] sm:$0xff] %v588
        %621 = vst [vmem:[%s305 + $0x70] sm:$0xff] %v589
        %622 = vst [vmem:[%s305 + $0x78] sm:$0xff] %v590
        %623 = vst [vmem:[%s305 + $0x80] sm:$0xff] %v591
        %624 = vst [vmem:[%s305 + $0x88] sm:$0xff] %v592
        %625 = vst [vmem:[%s305 + $0x90] sm:$0xff] %v593
        %626 = vst [vmem:[%s305 + $0x98] sm:$0xff] %v594
        %627 = vst [vmem:[%s305 + $0xa0] sm:$0xff] %v595
        %628 = vst [vmem:[%s305 + $0xa8] sm:$0xff] %v596
        %629 = vst [vmem:[%s305 + $0xb0] sm:$0xff] %v597
        %630 = vst [vmem:[%s305 + $0xb8] sm:$0xff] %v598
        %631 = vst [vmem:[%s305 + $0xc0] sm:$0xff] %v599
        %632 = vst [vmem:[%s305 + $0xc8] sm:$0xff] %v600
        %633 = vst [vmem:[%s305 + $0xd0] sm:$0xff] %v601
        %634 = vst [vmem:[%s305 + $0xd8] sm:$0xff] %v602
        %635 = vst [vmem:[%s305 + $0xe0] sm:$0xff] %v603
        %636 = vst [vmem:[%s305 + $0xe8] sm:$0xff] %v604
        %637 = vst [vmem:[%s305 + $0xf0] sm:$0xff] %v605
        %638 = vst [vmem:[%s305 + $0xf8] sm:$0xff] %v606
        %639 = vmatprep.subr.mxu0 0.0
        %640 = vmatpush1.msra.mxu0 %v351
        %641 = vmatprep.subr.mxu0 0.0
        %642 = vmatpush1.msra.mxu0 %v352
        %643 = vmatprep.subr.mxu0 0.0
        %644 = vmatpush1.msra.mxu0 %v353
        %645 = vmatprep.subr.mxu0 0.0
        %646 = vmatpush1.msra.mxu0 %v354
        %647 = vmatprep.subr.mxu0 0.0
        %648 = vmatpush1.msra.mxu0 %v355
        %649 = vmatprep.subr.mxu0 0.0
        %650 = vmatpush1.msra.mxu0 %v356
        %651 = vmatprep.subr.mxu0 0.0
        %652 = vmatpush1.msra.mxu0 %v357
        %653 = vmatprep.subr.mxu0 0.0
        %654 = vmatpush1.msra.mxu0 %v358
        %655 = vmatprep.subr.mxu0 0.0
        %656 = vmatpush1.msra.mxu0 %v359
        %657 = vmatprep.subr.mxu0 0.0
        %658 = vmatpush1.msra.mxu0 %v360
        %659 = vmatprep.subr.mxu0 0.0
        %660 = vmatpush1.msra.mxu0 %v361
        %661 = vmatprep.subr.mxu0 0.0
        %662 = vmatpush1.msra.mxu0 %v362
        %663 = vmatprep.subr.mxu0 0.0
        %664 = vmatpush1.msra.mxu0 %v363
        %665 = vmatprep.subr.mxu0 0.0
        %666 = vmatpush1.msra.mxu0 %v364
        %667 = vmatprep.subr.mxu0 0.0
        %668 = vmatpush1.msra.mxu0 %v365
        %669 = vmatprep.subr.mxu0 0.0
        %670 = vmatpush1.msra.mxu0 %v366
        %671 = vmatprep.subr.mxu0 0.0
        %672 = vmatpush1.msra.mxu0 0.0
        %673 = vmatprep.subr.mxu0 0.0
        %674 = vmatpush1.msra.mxu0 0.0
        %675 = vmatprep.subr.mxu0 0.0
        %676 = vmatpush1.msra.mxu0 0.0
        %677 = vmatprep.subr.mxu0 0.0
        %678 = vmatpush1.msra.mxu0 0.0
        %679 = vmatprep.subr.mxu0 0.0
        %680 = vmatpush1.msra.mxu0 0.0
        %681 = vmatprep.subr.mxu0 0.0
        %682 = vmatpush1.msra.mxu0 0.0
        %683 = vmatprep.subr.mxu0 0.0
        %684 = vmatpush1.msra.mxu0 0.0
        %685 = vmatprep.subr.mxu0 0.0
        %686 = vmatpush1.msra.mxu0 0.0
        %687 = vmatprep.subr.mxu0 0.0
        %688 = vmatpush1.msra.mxu0 0.0
        %689 = vmatprep.subr.mxu0 0.0
        %690 = vmatpush1.msra.mxu0 0.0
        %691 = vmatprep.subr.mxu0 0.0
        %692 = vmatpush1.msra.mxu0 0.0
        %693 = vmatprep.subr.mxu0 0.0
        %694 = vmatpush1.msra.mxu0 0.0
        %695 = vmatprep.subr.mxu0 0.0
        %696 = vmatpush1.msra.mxu0 0.0
        %697 = vmatprep.subr.mxu0 0.0
        %698 = vmatpush1.msra.mxu0 0.0
        %699 = vmatprep.subr.mxu0 0.0
        %700 = vmatpush1.msra.mxu0 0.0
        %701 = vmatprep.subr.mxu0 0.0
        %702 = vmatpush1.msra.mxu0 0.0
        %703 = vmatprep.mubr.f32.mxu0 0.0
        %704 = vmatmul.mubr.f32.gmra.mrb[0].mxu0 %v399
        %v705 = vpop.f32.mrb[0].mxu0
        %v706 = vadd.f32 0.0, %v705
        %v707 = vpop.f32.mrb[0].mxu0
        %708 = vmatprep.mubr.f32.mxu0 0.0
        %709 = vmatmul.mubr.f32.gmra.mrb[0].mxu0 %v400
        %v710 = vpop.f32.mrb[0].mxu0
        %v711 = vadd.f32 0.0, %v710
        %v712 = vpop.f32.mrb[0].mxu0
        %713 = vmatprep.mubr.f32.mxu0 0.0
        %714 = vmatmul.mubr.f32.gmra.mrb[0].mxu0 %v401
        %v715 = vpop.f32.mrb[0].mxu0
        %v716 = vadd.f32 0.0, %v715
        %v717 = vpop.f32.mrb[0].mxu0
        %718 = vmatprep.mubr.f32.mxu0 0.0
        %719 = vmatmul.mubr.f32.gmra.mrb[0].mxu0 %v402
        %v720 = vpop.f32.mrb[0].mxu0
        %v721 = vadd.f32 0.0, %v720
        %v722 = vpop.f32.mrb[0].mxu0
        %723 = vmatprep.mubr.f32.mxu0 0.0
        %724 = vmatmul.mubr.f32.gmra.mrb[0].mxu0 %v403
        %v725 = vpop.f32.mrb[0].mxu0
        %v726 = vadd.f32 0.0, %v725
        %v727 = vpop.f32.mrb[0].mxu0
        %728 = vmatprep.mubr.f32.mxu0 0.0
        %729 = vmatmul.mubr.f32.gmra.mrb[0].mxu0 %v404
        %v730 = vpop.f32.mrb[0].mxu0
        %v731 = vadd.f32 0.0, %v730
        %v732 = vpop.f32.mrb[0].mxu0
        %733 = vmatprep.mubr.f32.mxu0 0.0
        %734 = vmatmul.mubr.f32.gmra.mrb[0].mxu0 %v405
        %v735 = vpop.f32.mrb[0].mxu0
        %v736 = vadd.f32 0.0, %v735
        %v737 = vpop.f32.mrb[0].mxu0
        %738 = vmatprep.mubr.f32.mxu0 0.0
        %739 = vmatmul.mubr.f32.gmra.mrb[0].mxu0 %v406
        %v740 = vpop.f32.mrb[0].mxu0
        %v741 = vadd.f32 0.0, %v740
        %v742 = vpop.f32.mrb[0].mxu0
        %743 = vmatprep.mubr.f32.mxu0 0.0
        %744 = vmatmul.mubr.f32.gmra.mrb[0].mxu0 %v407
        %v745 = vpop.f32.mrb[0].mxu0
        %v746 = vadd.f32 0.0, %v745
        %v747 = vpop.f32.mrb[0].mxu0
        %748 = vmatprep.mubr.f32.mxu0 0.0
        %749 = vmatmul.mubr.f32.gmra.mrb[0].mxu0 %v408
        %v750 = vpop.f32.mrb[0].mxu0
        %v751 = vadd.f32 0.0, %v750
        %v752 = vpop.f32.mrb[0].mxu0
        %753 = vmatprep.mubr.f32.mxu0 0.0
        %754 = vmatmul.mubr.f32.gmra.mrb[0].mxu0 %v409
        %v755 = vpop.f32.mrb[0].mxu0
        %v756 = vadd.f32 0.0, %v755
        %v757 = vpop.f32.mrb[0].mxu0
        %758 = vmatprep.mubr.f32.mxu0 0.0
        %759 = vmatmul.mubr.f32.gmra.mrb[0].mxu0 %v410
        %v760 = vpop.f32.mrb[0].mxu0
        %v761 = vadd.f32 0.0, %v760
        %v762 = vpop.f32.mrb[0].mxu0
        %763 = vmatprep.mubr.f32.mxu0 0.0
        %764 = vmatmul.mubr.f32.gmra.mrb[0].mxu0 %v411
        %v765 = vpop.f32.mrb[0].mxu0
        %v766 = vadd.f32 0.0, %v765
        %v767 = vpop.f32.mrb[0].mxu0
        %768 = vmatprep.mubr.f32.mxu0 0.0
        %769 = vmatmul.mubr.f32.gmra.mrb[0].mxu0 %v412
        %v770 = vpop.f32.mrb[0].mxu0
        %v771 = vadd.f32 0.0, %v770
        %v772 = vpop.f32.mrb[0].mxu0
        %773 = vmatprep.mubr.f32.mxu0 0.0
        %774 = vmatmul.mubr.f32.gmra.mrb[0].mxu0 %v413
        %v775 = vpop.f32.mrb[0].mxu0
        %v776 = vadd.f32 0.0, %v775
        %v777 = vpop.f32.mrb[0].mxu0
        %778 = vmatprep.mubr.f32.mxu0 0.0
        %779 = vmatmul.mubr.f32.gmra.mrb[0].mxu0 %v414
        %v780 = vpop.f32.mrb[0].mxu0
        %v781 = vadd.f32 0.0, %v780
        %v782 = vpop.f32.mrb[0].mxu0
        %783 = vdwg.mxu0
        %784 = vmatprep.subr.mxu0 0.0
        %785 = vmatpush1.msra.mxu0 %v367
        %786 = vmatprep.subr.mxu0 0.0
        %787 = vmatpush1.msra.mxu0 %v368
        %788 = vmatprep.subr.mxu0 0.0
        %789 = vmatpush1.msra.mxu0 %v369
        %790 = vmatprep.subr.mxu0 0.0
        %791 = vmatpush1.msra.mxu0 %v370
        %792 = vmatprep.subr.mxu0 0.0
        %793 = vmatpush1.msra.mxu0 %v371
        %794 = vmatprep.subr.mxu0 0.0
        %795 = vmatpush1.msra.mxu0 %v372
        %796 = vmatprep.subr.mxu0 0.0
        %797 = vmatpush1.msra.mxu0 %v373
        %798 = vmatprep.subr.mxu0 0.0
        %799 = vmatpush1.msra.mxu0 %v374
        %800 = vmatprep.subr.mxu0 0.0
        %801 = vmatpush1.msra.mxu0 %v375
        %802 = vmatprep.subr.mxu0 0.0
        %803 = vmatpush1.msra.mxu0 %v376
        %804 = vmatprep.subr.mxu0 0.0
        %805 = vmatpush1.msra.mxu0 %v377
        %806 = vmatprep.subr.mxu0 0.0
        %807 = vmatpush1.msra.mxu0 %v378
        %808 = vmatprep.subr.mxu0 0.0
        %809 = vmatpush1.msra.mxu0 %v379
        %810 = vmatprep.subr.mxu0 0.0
        %811 = vmatpush1.msra.mxu0 %v380
        %812 = vmatprep.subr.mxu0 0.0
        %813 = vmatpush1.msra.mxu0 %v381
        %814 = vmatprep.subr.mxu0 0.0
        %815 = vmatpush1.msra.mxu0 %v382
        %816 = vmatprep.subr.mxu0 0.0
        %817 = vmatpush1.msra.mxu0 0.0
        %818 = vmatprep.subr.mxu0 0.0
        %819 = vmatpush1.msra.mxu0 0.0
        %820 = vmatprep.subr.mxu0 0.0
        %821 = vmatpush1.msra.mxu0 0.0
        %822 = vmatprep.subr.mxu0 0.0
        %823 = vmatpush1.msra.mxu0 0.0
        %824 = vmatprep.subr.mxu0 0.0
        %825 = vmatpush1.msra.mxu0 0.0
        %826 = vmatprep.subr.mxu0 0.0
        %827 = vmatpush1.msra.mxu0 0.0
        %828 = vmatprep.subr.mxu0 0.0
        %829 = vmatpush1.msra.mxu0 0.0
        %830 = vmatprep.subr.mxu0 0.0
        %831 = vmatpush1.msra.mxu0 0.0
        %832 = vmatprep.subr.mxu0 0.0
        %833 = vmatpush1.msra.mxu0 0.0
        %834 = vmatprep.subr.mxu0 0.0
        %835 = vmatpush1.msra.mxu0 0.0
        %836 = vmatprep.subr.mxu0 0.0
        %837 = vmatpush1.msra.mxu0 0.0
        %838 = vmatprep.subr.mxu0 0.0
        %839 = vmatpush1.msra.mxu0 0.0
        %840 = vmatprep.subr.mxu0 0.0
        %841 = vmatpush1.msra.mxu0 0.0
        %842 = vmatprep.subr.mxu0 0.0
        %843 = vmatpush1.msra.mxu0 0.0
        %844 = vmatprep.subr.mxu0 0.0
        %845 = vmatpush1.msra.mxu0 0.0
        %846 = vmatprep.subr.mxu0 0.0
        %847 = vmatpush1.msra.mxu0 0.0
        %848 = vmatprep.mubr.f32.mxu0 0.0
        %849 = vmatmul.mubr.f32.gmra.mrb[0].mxu0 %v431
        %v850 = vpop.f32.mrb[0].mxu0
        %v851 = vadd.f32 0.0, %v850
        %v852 = vpop.f32.mrb[0].mxu0
        %853 = vmatprep.mubr.f32.mxu0 0.0
        %854 = vmatmul.mubr.f32.gmra.mrb[0].mxu0 %v432
        %v855 = vpop.f32.mrb[0].mxu0
        %v856 = vadd.f32 0.0, %v855
        %v857 = vpop.f32.mrb[0].mxu0
        %858 = vmatprep.mubr.f32.mxu0 0.0
        %859 = vmatmul.mubr.f32.gmra.mrb[0].mxu0 %v433
        %v860 = vpop.f32.mrb[0].mxu0
        %v861 = vadd.f32 0.0, %v860
        %v862 = vpop.f32.mrb[0].mxu0
        %863 = vmatprep.mubr.f32.mxu0 0.0
        %864 = vmatmul.mubr.f32.gmra.mrb[0].mxu0 %v434
        %v865 = vpop.f32.mrb[0].mxu0
        %v866 = vadd.f32 0.0, %v865
        %v867 = vpop.f32.mrb[0].mxu0
        %868 = vmatprep.mubr.f32.mxu0 0.0
        %869 = vmatmul.mubr.f32.gmra.mrb[0].mxu0 %v435
        %v870 = vpop.f32.mrb[0].mxu0
        %v871 = vadd.f32 0.0, %v870
        %v872 = vpop.f32.mrb[0].mxu0
        %873 = vmatprep.mubr.f32.mxu0 0.0
        %874 = vmatmul.mubr.f32.gmra.mrb[0].mxu0 %v436
        %v875 = vpop.f32.mrb[0].mxu0
        %v876 = vadd.f32 0.0, %v875
        %v877 = vpop.f32.mrb[0].mxu0
        %878 = vmatprep.mubr.f32.mxu0 0.0
        %879 = vmatmul.mubr.f32.gmra.mrb[0].mxu0 %v437
        %v880 = vpop.f32.mrb[0].mxu0
        %v881 = vadd.f32 0.0, %v880
        %v882 = vpop.f32.mrb[0].mxu0
        %883 = vmatprep.mubr.f32.mxu0 0.0
        %884 = vmatmul.mubr.f32.gmra.mrb[0].mxu0 %v438
        %v885 = vpop.f32.mrb[0].mxu0
        %v886 = vadd.f32 0.0, %v885
        %v887 = vpop.f32.mrb[0].mxu0
        %888 = vmatprep.mubr.f32.mxu0 0.0
        %889 = vmatmul.mubr.f32.gmra.mrb[0].mxu0 %v439
        %v890 = vpop.f32.mrb[0].mxu0
        %v891 = vadd.f32 0.0, %v890
        %v892 = vpop.f32.mrb[0].mxu0
        %893 = vmatprep.mubr.f32.mxu0 0.0
        %894 = vmatmul.mubr.f32.gmra.mrb[0].mxu0 %v440
        %v895 = vpop.f32.mrb[0].mxu0
        %v896 = vadd.f32 0.0, %v895
        %v897 = vpop.f32.mrb[0].mxu0
        %898 = vmatprep.mubr.f32.mxu0 0.0
        %899 = vmatmul.mubr.f32.gmra.mrb[0].mxu0 %v441
        %v900 = vpop.f32.mrb[0].mxu0
        %v901 = vadd.f32 0.0, %v900
        %v902 = vpop.f32.mrb[0].mxu0
        %903 = vmatprep.mubr.f32.mxu0 0.0
        %904 = vmatmul.mubr.f32.gmra.mrb[0].mxu0 %v442
        %v905 = vpop.f32.mrb[0].mxu0
        %v906 = vadd.f32 0.0, %v905
        %v907 = vpop.f32.mrb[0].mxu0
        %908 = vmatprep.mubr.f32.mxu0 0.0
        %909 = vmatmul.mubr.f32.gmra.mrb[0].mxu0 %v443
        %v910 = vpop.f32.mrb[0].mxu0
        %v911 = vadd.f32 0.0, %v910
        %v912 = vpop.f32.mrb[0].mxu0
        %913 = vmatprep.mubr.f32.mxu0 0.0
        %914 = vmatmul.mubr.f32.gmra.mrb[0].mxu0 %v444
        %v915 = vpop.f32.mrb[0].mxu0
        %v916 = vadd.f32 0.0, %v915
        %v917 = vpop.f32.mrb[0].mxu0
        %918 = vmatprep.mubr.f32.mxu0 0.0
        %919 = vmatmul.mubr.f32.gmra.mrb[0].mxu0 %v445
        %v920 = vpop.f32.mrb[0].mxu0
        %v921 = vadd.f32 0.0, %v920
        %v922 = vpop.f32.mrb[0].mxu0
        %923 = vmatprep.mubr.f32.mxu0 0.0
        %924 = vmatmul.mubr.f32.gmra.mrb[0].mxu0 %v446
        %v925 = vpop.f32.mrb[0].mxu0
        %v926 = vadd.f32 0.0, %v925
        %v927 = vpop.f32.mrb[0].mxu0
        %928 = vdwg.mxu0
        %929 = vst [vmem:[%s312] sm:$0xff] %v706
        %930 = vst [vmem:[%s312 + $0x8] sm:$0xff] %v711
        %931 = vst [vmem:[%s312 + $0x10] sm:$0xff] %v716
        %932 = vst [vmem:[%s312 + $0x18] sm:$0xff] %v721
        %933 = vst [vmem:[%s312 + $0x20] sm:$0xff] %v726
        %934 = vst [vmem:[%s312 + $0x28] sm:$0xff] %v731
        %935 = vst [vmem:[%s312 + $0x30] sm:$0xff] %v736
        %936 = vst [vmem:[%s312 + $0x38] sm:$0xff] %v741
        %937 = vst [vmem:[%s312 + $0x40] sm:$0xff] %v746
        %938 = vst [vmem:[%s312 + $0x48] sm:$0xff] %v751
        %939 = vst [vmem:[%s312 + $0x50] sm:$0xff] %v756
        %940 = vst [vmem:[%s312 + $0x58] sm:$0xff] %v761
        %941 = vst [vmem:[%s312 + $0x60] sm:$0xff] %v766
        %942 = vst [vmem:[%s312 + $0x68] sm:$0xff] %v771
        %943 = vst [vmem:[%s312 + $0x70] sm:$0xff] %v776
        %944 = vst [vmem:[%s312 + $0x78] sm:$0xff] %v781
        %945 = vst [vmem:[%s312 + $0x80] sm:$0xff] %v851
        %946 = vst [vmem:[%s312 + $0x88] sm:$0xff] %v856
        %947 = vst [vmem:[%s312 + $0x90] sm:$0xff] %v861
        %948 = vst [vmem:[%s312 + $0x98] sm:$0xff] %v866
        %949 = vst [vmem:[%s312 + $0xa0] sm:$0xff] %v871
        %950 = vst [vmem:[%s312 + $0xa8] sm:$0xff] %v876
        %951 = vst [vmem:[%s312 + $0xb0] sm:$0xff] %v881
        %952 = vst [vmem:[%s312 + $0xb8] sm:$0xff] %v886
        %953 = vst [vmem:[%s312 + $0xc0] sm:$0xff] %v891
        %954 = vst [vmem:[%s312 + $0xc8] sm:$0xff] %v896
        %955 = vst [vmem:[%s312 + $0xd0] sm:$0xff] %v901
        %956 = vst [vmem:[%s312 + $0xd8] sm:$0xff] %v906
        %957 = vst [vmem:[%s312 + $0xe0] sm:$0xff] %v911
        %958 = vst [vmem:[%s312 + $0xe8] sm:$0xff] %v916
        %959 = vst [vmem:[%s312 + $0xf0] sm:$0xff] %v921
        %960 = vst [vmem:[%s312 + $0xf8] sm:$0xff] %v926
        %s961 = sand.u32 %s92, 1
        %s962 = scalar_lea.sflag [#allocation4], %s961
        %s963 = sand.u32 %s92, 1
        %s964 = smul.addr %s963, 256
        %s965 = scalar_lea.vmem [#allocation7], %s964
        %s966 = sand.u32 %s32, 1
        %s967 = scalar_lea.sflag [#allocation9], %s966
        %s968 = sand.u32 %s118, 1
        %s969 = smul.addr %s968, 256
        %s970 = scalar_lea.vmem [#allocation8], %s969
        %s971 = sand.u32 %s32, 1
        %s972 = scalar_lea.sflag [#allocation9], %s971
        %s973 = sand.u32 %s144, 1
        %s974 = smul.addr %s973, 256
        %s975 = scalar_lea.vmem [#allocation10], %s974
        %s976 = sand.u32 %s170, 1
        %s977 = scalar_lea.sflag [#allocation12], %s976
        %s978 = sand.u32 %s170, 1
        %s979 = smul.addr %s978, 256
        %s980 = scalar_lea.vmem [#allocation11], %s979
        // Predicated region
        $region37: #{tpu_custom_call.1} parent=27 // pred_check
          %p981 = pneg %p102
        $region38: #{tpu_custom_call.1} parent=27 // pred_check_branch
          %983 = sbr.rel (%p981) target = $region40
        $region39: #{tpu_custom_call.1} parent=27 // pred_region
          %s984 = smul.u32 2, %s32
          %s986 = ssub.s32 4096, 4096
          %987 = vsyncadd %s962, %s986
          %s988 = smul.addr %s984, 16
          %s989 = smul.addr %s988, 128
          %s990 = scalar_lea.hbm %s2, %s989
          %s991 = sshll.u32 %s965, 4
          %s992 = int_to_ptr.vmem [resolvable:$true] %s991
          %997 = dma.vmem_to_hbm [thread:$0]  %s992, 4096, %s990, %s962, 128, 128, 8
        $region40: #{tpu_custom_call.1} parent=27 // pred_fallthru
          _
        // Predicated region
        $region41: #{tpu_custom_call.1} parent=27 // pred_check
          %p998 = pneg %p128
        $region42: #{tpu_custom_call.1} parent=27 // pred_check_branch
          %1000 = sbr.rel (%p998) target = $region44
        $region43: #{tpu_custom_call.1} parent=27 // pred_region
          %s1001 = smul.u32 2, %s32
          %s1003 = ssub.s32 4096, 4096
          %1004 = vsyncadd %s967, %s1003
          %s1005 = smul.addr %s1001, 16
          %s1006 = smul.addr %s1005, 128
          %s1007 = scalar_lea.hbm %s3, %s1006
          %s1008 = sshll.u32 %s970, 4
          %s1009 = int_to_ptr.vmem [resolvable:$true] %s1008
          %1014 = dma.vmem_to_hbm [thread:$0]  %s1009, 4096, %s1007, %s967, 128, 128, 8
        $region44: #{tpu_custom_call.1} parent=27 // pred_fallthru
          _
        // Predicated region
        $region45: #{tpu_custom_call.1} parent=27 // pred_check
          %p1015 = pneg %p154
        $region46: #{tpu_custom_call.1} parent=27 // pred_check_branch
          %1017 = sbr.rel (%p1015) target = $region48
        $region47: #{tpu_custom_call.1} parent=27 // pred_region
          %s1018 = smul.u32 2, %s32
          %s1020 = ssub.s32 4096, 4096
          %1021 = vsyncadd %s972, %s1020
          %s1022 = smul.addr %s1018, 16
          %s1023 = smul.addr %s1022, 128
          %s1024 = scalar_lea.hbm %s4, %s1023
          %s1025 = sshll.u32 %s975, 4
          %s1026 = int_to_ptr.vmem [resolvable:$true] %s1025
          %1031 = dma.vmem_to_hbm [thread:$0]  %s1026, 4096, %s1024, %s972, 128, 128, 8
        $region48: #{tpu_custom_call.1} parent=27 // pred_fallthru
          _
        // Predicated region
        $region49: #{tpu_custom_call.1} parent=27 // pred_check
          %p1032 = pneg %p180
        $region50: #{tpu_custom_call.1} parent=27 // pred_check_branch
          %1034 = sbr.rel (%p1032) target = $region52
        $region51: #{tpu_custom_call.1} parent=27 // pred_region
          %s1035 = smul.u32 2, %s32
          %s1037 = ssub.s32 4096, 4096
          %1038 = vsyncadd %s977, %s1037
          %s1039 = smul.addr %s1035, 16
          %s1040 = smul.addr %s1039, 128
          %s1041 = scalar_lea.hbm %s5, %s1040
          %s1042 = sshll.u32 %s980, 4
          %s1043 = int_to_ptr.vmem [resolvable:$true] %s1042
          %1048 = dma.vmem_to_hbm [thread:$0]  %s1043, 4096, %s1041, %s977, 128, 128, 8
        $region52: #{tpu_custom_call.1} parent=27 // pred_fallthru
          _
      $region28: #{tpu_custom_call.1} parent=5 // pred_fallthru
        _
      %p1049 = scmp.le.s32.totalorder 2, %s27
      // Predicated region
      $region53: #{tpu_custom_call.1} parent=5 // pred_check
        %p1050 = pneg %p1049
      $region54: #{tpu_custom_call.1} parent=5 // pred_check_branch
        %1052 = sbr.rel (%p1050) target = $region56
      $region55: #{tpu_custom_call.1} parent=5 // pred_region
        %s1053 = ssub.s32 %s27, 2
        // Predicated region
        $region57: #{tpu_custom_call.1} parent=55 // pred_check
          %p1054 = pneg %p108
        $region58: #{tpu_custom_call.1} parent=55 // pred_check_branch
          %1056 = sbr.rel (%p1054) target = $region60
        $region59: #{tpu_custom_call.1} parent=55 // pred_region
          %s1057 = sand.u32 %s93, 1
          %s1058 = scalar_lea.sflag [#allocation4], %s1057
          %s1059 = sand.u32 %s93, 1
          %s1060 = smul.addr %s1059, 256
          %s1061 = scalar_lea.vmem [#allocation7], %s1060
          %1062 = dma.done %s1058, 4096
        $region60: #{tpu_custom_call.1} parent=55 // pred_fallthru
          _
        // Predicated region
        $region61: #{tpu_custom_call.1} parent=55 // pred_check
          %p1063 = pneg %p134
        $region62: #{tpu_custom_call.1} parent=55 // pred_check_branch
          %1065 = sbr.rel (%p1063) target = $region64
        $region63: #{tpu_custom_call.1} parent=55 // pred_region
          %s1066 = sand.u32 %s33, 1
          %s1067 = scalar_lea.sflag [#allocation9], %s1066
          %s1068 = sand.u32 %s119, 1
          %s1069 = smul.addr %s1068, 256
          %s1070 = scalar_lea.vmem [#allocation8], %s1069
          %1071 = dma.done %s1067, 4096
        $region64: #{tpu_custom_call.1} parent=55 // pred_fallthru
          _
        // Predicated region
        $region65: #{tpu_custom_call.1} parent=55 // pred_check
          %p1072 = pneg %p160
        $region66: #{tpu_custom_call.1} parent=55 // pred_check_branch
          %1074 = sbr.rel (%p1072) target = $region68
        $region67: #{tpu_custom_call.1} parent=55 // pred_region
          %s1075 = sand.u32 %s33, 1
          %s1076 = scalar_lea.sflag [#allocation9], %s1075
          %s1077 = sand.u32 %s145, 1
          %s1078 = smul.addr %s1077, 256
          %s1079 = scalar_lea.vmem [#allocation10], %s1078
          %1080 = dma.done %s1076, 4096
        $region68: #{tpu_custom_call.1} parent=55 // pred_fallthru
          _
        // Predicated region
        $region69: #{tpu_custom_call.1} parent=55 // pred_check
          %p1081 = pneg %p186
        $region70: #{tpu_custom_call.1} parent=55 // pred_check_branch
          %1083 = sbr.rel (%p1081) target = $region72
        $region71: #{tpu_custom_call.1} parent=55 // pred_region
          %s1084 = sand.u32 %s171, 1
          %s1085 = scalar_lea.sflag [#allocation12], %s1084
          %s1086 = sand.u32 %s171, 1
          %s1087 = smul.addr %s1086, 256
          %s1088 = scalar_lea.vmem [#allocation11], %s1087
          %1089 = dma.done %s1085, 4096
        $region72: #{tpu_custom_call.1} parent=55 // pred_fallthru
          _
      $region56: #{tpu_custom_call.1} parent=5 // pred_fallthru
        _
    $region6: #{tpu_custom_call.1} parent=1 // loop_footer
      %s31 = sadd.s32 1, %s27
    $region7: #{tpu_custom_call.1} parent=1 // loop_footer_branch
      %26 = sbr.rel target = $region3
    $region8: #{tpu_custom_call.1} parent=1 // loop_exit
      _
    %1090 = vsyncpa [#allocation3], 1
    %s1091 = scalar_lea.sflag [#allocation3], 1
    %1092 = vsyncpa %s1091, 1
    %1093 = vsyncpa [#allocation6], 1
    %s1094 = scalar_lea.sflag [#allocation6], 1
    %1095 = vsyncpa %s1094, 1
    %1096 = vsyncpa [#allocation4], 1
    %s1097 = scalar_lea.sflag [#allocation4], 1
    %1098 = vsyncpa %s1097, 1
    %1099 = vsyncpa [#allocation9], 1
    %s1100 = scalar_lea.sflag [#allocation9], 1
    %1101 = vsyncpa %s1100, 1
    %1102 = vsyncpa [#allocation12], 1
    %s1103 = scalar_lea.sflag [#allocation12], 1
    %1104 = vsyncpa %s1103, 1

</llo_original>
